<compile_context>
chip_gen: v7x
topology: tpu7x:2x2x1
jax: 0.10.0
libtpu: 0.0.40
codegen_flags: <defaults>
</compile_context>

<pallas_src>
import functools

import jax
import jax.numpy as jnp
from jax.experimental import pallas as pl
from jax.experimental.pallas import tpu as pltpu


# Batches below this run through plain XLA (three tiny GEMMs fuse into one
# kernel there and beat a custom-call dispatch + layout plumbing).
_SMALL_B_PALLAS_THRESHOLD = 4096


def cnet_kernel(xa_ref, p_ref, o_ref):
    """xa_ref: [K, TB]  lane-major slab (rows = [s^T ; a^T], batch on lanes)
       p_ref : [H+1, K+2] packed params (resident across the batch grid):
                 cols 0..K-1 : fused first-layer weight [W_net | W_a] (row H = 0)
                 col  K      : fused bias b_net + b_a   (row H = 1 -> constant unit)
                 col  K+1    : out-projection column w_out (row H = b_out)
       o_ref : [1, TB]  lane-dense output row."""
    k = xa_ref.shape[0]                 # static: 3 + a_dim (<= 8 => one f32 sublane tile)
    x = xa_ref[...]                     # may be bf16 when streaming in half precision

    w1 = p_ref[:, 0:k]                  # [H+1, K]
    bias = p_ref[:, k:k + 1]            # [H+1, 1]
    wo = p_ref[:, k + 1:k + 2]          # [H+1, 1]

    # One MXU matmul replaces net(_s) + fca(_a); the fused bias is a VPU
    # broadcast-add (keeps K <= 8 instead of burning a sublane on a ones row).
    # Row H of w1 is zero and bias[H] == 1, so relu yields a constant-1 hidden
    # unit that carries b_out through the output column.
    h = jnp.maximum(
        jnp.dot(w1.astype(x.dtype), x, preferred_element_type=jnp.float32) + bias,
        0.0,
    )                                   # [H+1, TB] float32

    # 30 -> 1 projection as VPU multiply + sublane (XLU) reduce instead of an
    # N=1 MXU matmul; result is lane-major -> unmasked dense store.
    o_ref[...] = jnp.sum(h * wo, axis=0, keepdims=True)


def _round_up(x, m):
    return ((x + m - 1) // m) * m


def _device_kind():
    try:
        return jax.devices()[0].device_kind.lower()
    except Exception:
        return ""


def _max_lane_tile():
    """Generation-aware cap on the batch lane tile (per perf review):
       v5e : 65536  (~16 MiB resident/step; near-roofline on ~0.8 TB/s HBM)
       v6e : 131072 (~32 MiB resident/step at ~1.4 TB/s)
       v7x : 131072 (fits the 64 MiB physical VMEM with double-buffering alive)."""
    kind = _device_kind()
    if "v5e" in kind or "v5 lite" in kind or "v5lite" in kind:
        return 65536
    return 131072


def _is_v7x():
    return "v7" in _device_kind()


def cnet_forward_lane_major(xa, packed, *, out_batch=None):
    """xa: [K, B] lane-major slab (rows = [s^T ; a^T]); packed: [H+1, K+2].
    Returns [B, 1] float32. Producers that already hold the activations
    lane-major should call this directly and skip the transpose/concat copy
    done by cnet_forward."""
    K, B = xa.shape
    Hp, Kp = packed.shape
    assert Kp == K + 2, (Kp, K)
    out_batch = B if out_batch is None else out_batch

    # Choose the grid so every block is full (no ragged edges): n steps of a
    # 128-aligned lane tile; padding waste is < 128 lanes per step.
    tb_max = _max_lane_tile()
    n = max(1, pl.cdiv(B, tb_max))
    if _is_v7x():
        # 2 TensorCores per chip: give the "parallel" grid an even, >=2-step
        # split so both cores share the batch.
        if n == 1 and B > 256:
            n = 2
        elif n > 1 and n % 2 == 1:
            n += 1
    TB = _round_up(pl.cdiv(B, n), 128)
    B_pad = n * TB
    if B_pad != B:
        xa = jnp.pad(xa, ((0, 0), (0, B_pad - B)))  # fuses with the producer copy under jit

    # Triple-buffer the only streamed input once the grid is long enough; the
    # loop is DMA-issue-latency bound and compute per step is negligible.
    xa_spec = pl.BlockSpec((K, TB), lambda i: (0, i))
    if n >= 3 and hasattr(pl, "Buffered"):
        try:
            xa_spec = pl.BlockSpec((K, TB), lambda i: (0, i),
                                   pipeline_mode=pl.Buffered(3))
        except TypeError:  # older BlockSpec signature without pipeline_mode
            pass

    out = pl.pallas_call(
        cnet_kernel,
        out_shape=jax.ShapeDtypeStruct((1, B_pad), jnp.float32),
        grid=(n,),
        in_specs=[
            xa_spec,                                    # streamed activation slab
            pl.BlockSpec((Hp, Kp), lambda i: (0, 0)),   # packed params, resident
        ],
        out_specs=pl.BlockSpec((1, TB), lambda i: (0, i)),  # lane-dense output row
        compiler_params=pltpu.CompilerParams(
            dimension_semantics=("parallel",),          # 2-TC batch sharding on v7x
            vmem_limit_bytes=64 * 1024 * 1024,          # large lane tiles exceed scoped defaults
        ),
    )(xa, packed)

    return out[0, :out_batch].reshape(out_batch, 1)


def _cnet_forward_xla(s, a, packed):
    """Small-B fast path: plain XLA, fuses into one tiny fusion."""
    Hp, Kp = packed.shape
    H, K = Hp - 1, Kp - 2
    w1 = packed[:H, :K]          # [H, K] = [W_net | W_a]
    b1 = packed[:H, K]           # [H]    = b_net + b_a
    wo = packed[:H, K + 1]       # [H]
    bo = packed[H, K + 1]        # scalar b_out
    xa = jnp.concatenate([s, a], axis=1).astype(jnp.float32)   # [B, K]
    h = jnp.maximum(xa @ w1.T + b1, 0.0)
    return (h @ wo + bo).reshape(-1, 1)


def cnet_forward(s, a, packed, *, stream_dtype=jnp.float32, force_pallas=False):
    """s: [B, 3], a: [B, a_dim], packed: [H+1, K+2] -> [B, 1] float32.

    stream_dtype=jnp.bfloat16 halves HBM traffic of the streamed slab on the
    memory-bound large-B path (params stay f32, MXU accumulates in f32) at
    ~1e-2 relative accuracy instead of 1e-5."""
    B = s.shape[0]
    if B < _SMALL_B_PALLAS_THRESHOLD and not force_pallas:
        return _cnet_forward_xla(s, a, packed)

    # TODO(synk): producers that already hold s/a lane-major should call
    # cnet_forward_lane_major directly; this transpose/concat is one extra
    # HBM pass over the streamed inputs.
    xa = jnp.concatenate(
        [s.T.astype(stream_dtype), a.T.astype(stream_dtype)], axis=0)   # [K, B]
    return cnet_forward_lane_major(xa, packed, out_batch=B)


def init_params(key, s_dim, a_dim, hidden=30):
    """PyTorch-layout params (W: [out, in], b: [out]); weights ~ N(0, 0.1),
    biases use PyTorch's default uniform(-1/sqrt(fan_in), 1/sqrt(fan_in))."""
    ks = jax.random.split(key, 8)

    def linear(kw, kb, fan_in, fan_out):
        w = 0.1 * jax.random.normal(kw, (fan_out, fan_in), jnp.float32)
        bound = 1.0 / jnp.sqrt(jnp.float32(fan_in))
        b = jax.random.uniform(kb, (fan_out,), jnp.float32, -bound, bound)
        return w, b

    net_w, net_b = linear(ks[0], ks[1], 3, hidden)       # global Net: Linear(3, 30)
    fcs_w, fcs_b = linear(ks[2], ks[3], s_dim, hidden)   # fc_s (unused by forward)
    fca_w, fca_b = linear(ks[4], ks[5], a_dim, hidden)   # fca
    out_w, out_b = linear(ks[6], ks[7], hidden, 1)       # out
    return {
        "net_w": net_w, "net_b": net_b,
        "fcs_w": fcs_w, "fcs_b": fcs_b,   # parity only; not used by forward
        "fca_w": fca_w, "fca_b": fca_b,
        "out_w": out_w, "out_b": out_b,
    }


def pack_cnet_params(params):
    """One-time packing of the forward-pass params into a single VMEM block
    [H+1, K+2] with K = 3 + a_dim:
        cols 0..K-1 : [W_net | W_a]   (row H is zero)
        col  K      : b_net + b_a     (row H = 1 -> constant hidden unit)
        col  K+1    : W_out column    (row H = b_out)
    Keeps K <= 8 (one f32 sublane tile) for a_dim <= 5."""
    wn, bn = params["net_w"], params["net_b"]      # [H, 3],  [H]
    wa, ba = params["fca_w"], params["fca_b"]      # [H, A],  [H]
    wo, bo = params["out_w"], params["out_b"]      # [1, H],  [1]

    H = wn.shape[0]
    K = wn.shape[1] + wa.shape[1]

    packed = jnp.zeros((H + 1, K + 2), jnp.float32)
    packed = packed.at[:H, :wn.shape[1]].set(wn)           # W_net
    packed = packed.at[:H, wn.shape[1]:K].set(wa)          # W_a
    packed = packed.at[:H, K].set(bn + ba)                 # fused bias column
    packed = packed.at[H, K].set(1.0)                      # constant unit: relu(0+1)=1
    packed = packed.at[:H, K + 1].set(wo[0])               # out-weight column
    packed = packed.at[H, K + 1].set(bo[0])                # b_out via the constant unit
    return packed


if __name__ == "__main__":
    key = jax.random.PRNGKey(0)
    k_param, k_s, k_a, k_s2, k_a2 = jax.random.split(key, 5)

    S_DIM = 3   # forward uses the global `net` = Linear(3, 30), so _s has 3 features
    A_DIM = 4

    params = init_params(k_param, S_DIM, A_DIM)
    packed = pack_cnet_params(params)

    def reference(s, a):
        x = s @ params["net_w"].T + params["net_b"]
        y = a @ params["fca_w"].T + params["fca_b"]
        return jnp.maximum(x + y, 0.0) @ params["out_w"].T + params["out_b"]

    fwd_pallas = jax.jit(functools.partial(cnet_forward, force_pallas=True))
    fwd_auto = jax.jit(cnet_forward)

    # Small batch through the Pallas path (single 128-lane tile).
    B = 8
    s = jax.random.normal(k_s, (B, S_DIM), jnp.float32)
    a = jax.random.normal(k_a, (B, A_DIM), jnp.float32)
    out = jax.block_until_ready(fwd_pallas(s, a, packed))
    assert out.shape == (B, 1)
    assert jnp.allclose(out, reference(s, a), atol=1e-5, rtol=1e-5)

    # Non-multiple-of-128 batch exercises the lane padding / output slicing.
    B2 = 200
    s2 = jax.random.normal(k_s2, (B2, S_DIM), jnp.float32)
    a2 = jax.random.normal(k_a2, (B2, A_DIM), jnp.float32)
    out2 = jax.block_until_ready(fwd_pallas(s2, a2, packed))
    assert out2.shape == (B2, 1)
    assert jnp.allclose(out2, reference(s2, a2), atol=1e-5, rtol=1e-5)

    # Small-B fast path (plain XLA) must agree too.
    out_fast = jax.block_until_ready(fwd_auto(s, a, packed))
    assert jnp.allclose(out_fast, reference(s, a), atol=1e-5, rtol=1e-5)

    print("KERNEL_OK")
</pallas_src>

<mosaic_0001>
module attributes {stable_mosaic.version = 11 : i64} {
  func.func @cnet_kernel(%arg0: i32, %arg1: memref<7x128xf32, #tpu.memory_space<vmem>>, %arg2: memref<31x9xf32, #tpu.memory_space<vmem>>, %arg3: memref<1x128xf32, #tpu.memory_space<vmem>>) attributes {dimension_semantics = [#tpu.dimension_semantics<parallel>], iteration_bounds = array<i64: 1>, scalar_prefetch = 0 : i64, scratch_operands = 0 : i64, tpu.core_type = #tpu.core_type<tc>, window_params = [{transform_indices = @transform_0, window_bounds = array<i64: 7, 128>}, {pipeline_mode = #tpu.pipeline_mode<synchronous>, transform_indices = @transform_1, window_bounds = array<i64: 31, 9>}, {transform_indices = @transform_2, window_bounds = array<i64: 1, 128>}]} {
    %c0 = arith.constant 0 : index
    %c0_0 = arith.constant 0 : index
    %0 = vector.load %arg1[%c0, %c0_0] : memref<7x128xf32, #tpu.memory_space<vmem>>, vector<7x128xf32>
    %c0_1 = arith.constant 0 : index
    %c0_2 = arith.constant 0 : index
    %1 = vector.load %arg2[%c0_1, %c0_2] : memref<31x9xf32, #tpu.memory_space<vmem>>, vector<31x7xf32>
    %c0_3 = arith.constant 0 : index
    %c7 = arith.constant 7 : index
    %2 = vector.load %arg2[%c0_3, %c7] : memref<31x9xf32, #tpu.memory_space<vmem>>, vector<31x1xf32>
    %c0_4 = arith.constant 0 : index
    %c8 = arith.constant 8 : index
    %3 = vector.load %arg2[%c0_4, %c8] : memref<31x9xf32, #tpu.memory_space<vmem>>, vector<31x1xf32>
    %cst = arith.constant dense<0.000000e+00> : vector<31x128xf32>
    %4 = tpu.matmul %1, %0, %cst {dimension_numbers = #tpu.dot_dimension_numbers<[1], [0], [0], [1], [0, 0, 1, 1], [], []>} : vector<31x7xf32>, vector<7x128xf32>, vector<31x128xf32> -> vector<31x128xf32>
    %5 = vector.broadcast %2 : vector<31x1xf32> to vector<31x128xf32>
    %6 = arith.addf %4, %5 : vector<31x128xf32>
    %cst_5 = arith.constant 0.000000e+00 : f32
    %7 = vector.broadcast %cst_5 : f32 to vector<31x128xf32>
    %8 = arith.maximumf %6, %7 : vector<31x128xf32>
    %9 = vector.broadcast %3 : vector<31x1xf32> to vector<31x128xf32>
    %10 = arith.mulf %8, %9 : vector<31x128xf32>
    %cst_6 = arith.constant dense<0.000000e+00> : vector<128xf32>
    %11 = vector.multi_reduction <add>, %10, %cst_6 [0] : vector<31x128xf32> to vector<128xf32>
    %12 = vector.shape_cast %11 : vector<128xf32> to vector<1x128xf32>
    %c0_7 = arith.constant 0 : index
    %c0_8 = arith.constant 0 : index
    %13 = vector.load %arg3[%c0_7, %c0_8] : memref<1x128xf32, #tpu.memory_space<vmem>>, vector<1x128xf32>
    tpu.vector_store %arg3[%c0_7, %c0_8], %12 {strides = array<i32>} : memref<1x128xf32, #tpu.memory_space<vmem>>, vector<1x128xf32>,
    return
  }
  func.func @transform_0(%arg0: i32) -> (i32, i32) {
    %c0_i32 = arith.constant 0 : i32
    %c0_i32_0 = arith.constant 0 : i32
    return %c0_i32, %arg0 : i32, i32
  }
  func.func @transform_1(%arg0: i32) -> (i32, i32) {
    %c0_i32 = arith.constant 0 : i32
    %c0_i32_0 = arith.constant 0 : i32
    %c0_i32_1 = arith.constant 0 : i32
    return %c0_i32, %c0_i32_0 : i32, i32
  }
  func.func @transform_2(%arg0: i32) -> (i32, i32) {
    %c0_i32 = arith.constant 0 : i32
    %c0_i32_0 = arith.constant 0 : i32
    return %c0_i32, %arg0 : i32, i32
  }
}

</mosaic_0001>

<llo_original>
// kernel: cnet_forward.1
$region0: #{cnet_forward.1}
  #allocation0 [shape = 'u32[]', space=smem, size = 0x4, offset = 0x4, fixed_abs, tag = 'smem constant byte address 0x4 - core index']
  #allocation1 [shape = 'u32[144,128]{1,0:T(1,128)}', space=vmem, size = 0x12000, scoped, tag = 'internal scratch']
  %s0 = inlined_call_operand.hbm [shape: f32[7,128], index: 0, kind: input, shape index: {}]
  %s1 = inlined_call_operand.hbm [shape: f32[31,9], index: 1, kind: input, shape index: {}]
  %s2 = inlined_call_operand.hbm [shape: f32[1,128], index: 2, kind: output, shape index: {}]
  %s3 = sld [smem:[#allocation0]]
  $region26: #{cnet_forward.1} parent=0
    _
  %s5 = ssub.s32 1, %s3
  %s6 = scalar_select 0, %s5, %s3
  $region1: #{cnet_forward.1} parent=0
    #allocation2 [shape = 'u8[4096]{0}', space=vmem, size = 0x1000, scoped, tag = 'input window, operand 0, single buffered']
    #allocation3 [shape = 's32[1]{0}', space=sflag, size = 0x4, scoped, tag = 'scoped memory for cnet_forward.1']
    #allocation4 [shape = 's32[1]{0}', space=sflag, size = 0x4, scoped, tag = 'scoped memory for cnet_forward.1']
    #allocation5 [shape = 'u8[16384]{0}', space=vmem, size = 0x4000, scoped, tag = 'input window, operand 1, single buffered']
    #allocation6 [shape = 's32[1]{0}', space=sflag, size = 0x4, scoped, tag = 'scoped memory for cnet_forward.1']
    #allocation7 [shape = 'u8[512]{0}', space=vmem, size = 0x400, scoped, tag = 'output window, operand 0, single buffered']
    %7 = vsyncpa [#allocation3], 0
    %8 = vsyncpa [#allocation6], 0
    %9 = vsyncpa [#allocation4], 0
    // Predicated region
    $region2: #{cnet_forward.1} parent=1 // pred_check
      _
    $region3: #{cnet_forward.1} parent=1 // pred_check_branch
      %11 = sbr.rel (0) target = $region5
    $region4: #{cnet_forward.1} parent=1 // pred_region
      %s13 = ssub.s32 128, 128
      %14 = vsyncadd [#allocation3], %s13
      %s16 = sshll.u32 [#allocation2], 4
      %s17 = int_to_ptr.vmem [resolvable:$true] %s16
      %19 = dma.hbm_to_vmem [thread:$0]  %s0, 128, %s17, [#allocation3]
    $region5: #{cnet_forward.1} parent=1 // pred_fallthru
      _
    // Predicated region
    $region6: #{cnet_forward.1} parent=1 // pred_check
      _
    $region7: #{cnet_forward.1} parent=1 // pred_check_branch
      %21 = sbr.rel (0) target = $region9
    $region8: #{cnet_forward.1} parent=1 // pred_region
      %s23 = ssub.s32 512, 512
      %24 = vsyncadd [#allocation6], %s23
      %s25 = sshll.u32 [#allocation5], 4
      %s26 = int_to_ptr.vmem [resolvable:$true] %s25
      %31 = dma.hbm_to_vmem [thread:$0]  %s1, 512, %s26, [#allocation6], 128, 128, 8
    $region9: #{cnet_forward.1} parent=1 // pred_fallthru
      _
    // Predicated region
    $region10: #{cnet_forward.1} parent=1 // pred_check
      _
    $region11: #{cnet_forward.1} parent=1 // pred_check_branch
      %33 = sbr.rel (0) target = $region13
    $region12: #{cnet_forward.1} parent=1 // pred_region
      %34 = dma.done [#allocation3], 128
    $region13: #{cnet_forward.1} parent=1 // pred_fallthru
      _
    // Predicated region
    $region14: #{cnet_forward.1} parent=1 // pred_check
      _
    $region15: #{cnet_forward.1} parent=1 // pred_check_branch
      %36 = sbr.rel (0) target = $region17
    $region16: #{cnet_forward.1} parent=1 // pred_region
      %37 = dma.done [#allocation6], 512
    $region17: #{cnet_forward.1} parent=1 // pred_fallthru
      _
    %v38 = vld [vmem:[#allocation2] sm:$0x7f]
    %v39 = vld [vmem:[#allocation5] sm:$0xff]
    %v40 = vld [vmem:[#allocation5 + $0x8] sm:$0xff]
    %v41 = vld [vmem:[#allocation5 + $0x10] sm:$0xff]
    %v42 = vld [vmem:[#allocation5 + $0x18] sm:$0x7f]
    %44 = vset.pattern.permute.xlu0 7
    %45 = vperm.xlu0 %44, %v39
    %v46 = vpop.permute.xlu0 %45
    %49 = vset.pattern.permute.xlu0 7
    %50 = vperm.xlu0 %49, %v40
    %v51 = vpop.permute.xlu0 %50
    %54 = vset.pattern.permute.xlu0 7
    %55 = vperm.xlu0 %54, %v41
    %v56 = vpop.permute.xlu0 %55
    %59 = vset.pattern.permute.xlu0 7
    %60 = vperm.xlu0 %59, %v42
    %v61 = vpop.permute.xlu0 %60
    %vm63 = vcmask 56320
    %v64 = vsel %vm63, %v39, 0
    %v66 = vsel %vm63, %v40, 0
    %v68 = vsel %vm63, %v41, 0
    %v70 = vsel %vm63, %v42, 0
    %vm72 = vcmask 1046528
    %v74 = vsel %vm72, %v38, 0
    %76 = vmatprep.subr.mxu0 0.0
    %77 = vmatpush1.msra.mxu0 %v74
    %78 = vmatprep.subr.mxu0 0.0
    %79 = vmatpush1.msra.mxu0 0.0
    %80 = vmatprep.subr.mxu0 0.0
    %81 = vmatpush1.msra.mxu0 0.0
    %82 = vmatprep.subr.mxu0 0.0
    %83 = vmatpush1.msra.mxu0 0.0
    %84 = vmatprep.subr.mxu0 0.0
    %85 = vmatpush1.msra.mxu0 0.0
    %86 = vmatprep.subr.mxu0 0.0
    %87 = vmatpush1.msra.mxu0 0.0
    %88 = vmatprep.subr.mxu0 0.0
    %89 = vmatpush1.msra.mxu0 0.0
    %90 = vmatprep.subr.mxu0 0.0
    %91 = vmatpush1.msra.mxu0 0.0
    %92 = vmatprep.subr.mxu0 0.0
    %93 = vmatpush1.msra.mxu0 0.0
    %94 = vmatprep.subr.mxu0 0.0
    %95 = vmatpush1.msra.mxu0 0.0
    %96 = vmatprep.subr.mxu0 0.0
    %97 = vmatpush1.msra.mxu0 0.0
    %98 = vmatprep.subr.mxu0 0.0
    %99 = vmatpush1.msra.mxu0 0.0
    %100 = vmatprep.subr.mxu0 0.0
    %101 = vmatpush1.msra.mxu0 0.0
    %102 = vmatprep.subr.mxu0 0.0
    %103 = vmatpush1.msra.mxu0 0.0
    %104 = vmatprep.subr.mxu0 0.0
    %105 = vmatpush1.msra.mxu0 0.0
    %106 = vmatprep.subr.mxu0 0.0
    %107 = vmatpush1.msra.mxu0 0.0
    %108 = vmatprep.subr.mxu0 0.0
    %109 = vmatpush1.msra.mxu0 0.0
    %110 = vmatprep.subr.mxu0 0.0
    %111 = vmatpush1.msra.mxu0 0.0
    %112 = vmatprep.subr.mxu0 0.0
    %113 = vmatpush1.msra.mxu0 0.0
    %114 = vmatprep.subr.mxu0 0.0
    %115 = vmatpush1.msra.mxu0 0.0
    %116 = vmatprep.subr.mxu0 0.0
    %117 = vmatpush1.msra.mxu0 0.0
    %118 = vmatprep.subr.mxu0 0.0
    %119 = vmatpush1.msra.mxu0 0.0
    %120 = vmatprep.subr.mxu0 0.0
    %121 = vmatpush1.msra.mxu0 0.0
    %122 = vmatprep.subr.mxu0 0.0
    %123 = vmatpush1.msra.mxu0 0.0
    %124 = vmatprep.subr.mxu0 0.0
    %125 = vmatpush1.msra.mxu0 0.0
    %126 = vmatprep.subr.mxu0 0.0
    %127 = vmatpush1.msra.mxu0 0.0
    %128 = vmatprep.subr.mxu0 0.0
    %129 = vmatpush1.msra.mxu0 0.0
    %130 = vmatprep.subr.mxu0 0.0
    %131 = vmatpush1.msra.mxu0 0.0
    %132 = vmatprep.subr.mxu0 0.0
    %133 = vmatpush1.msra.mxu0 0.0
    %134 = vmatprep.subr.mxu0 0.0
    %135 = vmatpush1.msra.mxu0 0.0
    %136 = vmatprep.subr.mxu0 0.0
    %137 = vmatpush1.msra.mxu0 0.0
    %138 = vmatprep.subr.mxu0 0.0
    %139 = vmatpush1.msra.mxu0 0.0
    %140 = vmatprep.mubr.f32.mxu0 0.0
    %141 = vmatmul.mubr.f32.gmra.mrb[0].mxu0 %v64
    %v142 = vpop.f32.mrb[0].mxu0
    %v143 = vadd.f32 %v46, %v142
    %v144 = vpop.f32.mrb[0].mxu0
    %145 = vmatprep.mubr.f32.mxu0 0.0
    %146 = vmatmul.mubr.f32.gmra.mrb[0].mxu0 %v66
    %v147 = vpop.f32.mrb[0].mxu0
    %v148 = vadd.f32 %v51, %v147
    %v149 = vpop.f32.mrb[0].mxu0
    %150 = vmatprep.mubr.f32.mxu0 0.0
    %151 = vmatmul.mubr.f32.gmra.mrb[0].mxu0 %v68
    %v152 = vpop.f32.mrb[0].mxu0
    %v153 = vadd.f32 %v56, %v152
    %v154 = vpop.f32.mrb[0].mxu0
    %155 = vmatprep.mubr.f32.mxu0 0.0
    %156 = vmatmul.mubr.f32.gmra.mrb[0].mxu0 %v70
    %v157 = vpop.f32.mrb[0].mxu0
    %v158 = vadd.f32 %v61, %v157
    %v159 = vpop.f32.mrb[0].mxu0
    %160 = vdwg.mxu0
    %v161 = vmax.f32 %v143, 0.0
    %v162 = vmax.f32 %v148, 0.0
    %v163 = vmax.f32 %v153, 0.0
    %v164 = vmax.f32 %v158, 0.0
    %165 = vset.pattern.permute.xlu0 8
    %166 = vperm.xlu0 %165, %v39
    %v167 = vpop.permute.xlu0 %166
    %169 = vset.pattern.permute.xlu0 8
    %170 = vperm.xlu0 %169, %v40
    %v171 = vpop.permute.xlu0 %170
    %173 = vset.pattern.permute.xlu0 8
    %174 = vperm.xlu0 %173, %v41
    %v175 = vpop.permute.xlu0 %174
    %177 = vset.pattern.permute.xlu0 8
    %178 = vperm.xlu0 %177, %v42
    %v179 = vpop.permute.xlu0 %178
    %v181 = vmul.f32 %v161, %v167
    %v182 = vmul.f32 %v162, %v171
    %v183 = vmul.f32 %v163, %v175
    %v184 = vmul.f32 %v164, %v179
    %v185 = vadd.f32 %v181, %v182
    %v186 = vadd.f32 %v185, %v183
    %v187 = vsel %vm72, %v184, 0.0
    %v188 = vadd.f32 %v186, %v187
    %v189 = vrot.slane %v188, 4
    %v190 = vadd.f32 %v188, %v189
    %v191 = vrot.slane %v190, 2
    %v192 = vadd.f32 %v190, %v191
    %v193 = vrot.slane %v192, 1
    %v194 = vadd.f32 %v192, %v193
    %195 = vst [vmem:[#allocation7] sm:$0x1] %v194
    // Predicated region
    $region18: #{cnet_forward.1} parent=1 // pred_check
      _
    $region19: #{cnet_forward.1} parent=1 // pred_check_branch
      %197 = sbr.rel (0) target = $region21
    $region20: #{cnet_forward.1} parent=1 // pred_region
      %s199 = ssub.s32 16, 16
      %200 = vsyncadd [#allocation4], %s199
      %s202 = sshll.u32 [#allocation7], 4
      %s203 = int_to_ptr.vmem [resolvable:$true] %s202
      %205 = dma.vmem_to_hbm [thread:$0]  %s203, 16, %s2, [#allocation4]
    $region21: #{cnet_forward.1} parent=1 // pred_fallthru
      _
    // Predicated region
    $region22: #{cnet_forward.1} parent=1 // pred_check
      _
    $region23: #{cnet_forward.1} parent=1 // pred_check_branch
      %207 = sbr.rel (0) target = $region25
    $region24: #{cnet_forward.1} parent=1 // pred_region
      %208 = dma.done [#allocation4], 16
    $region25: #{cnet_forward.1} parent=1 // pred_fallthru
      _
    %209 = vsyncpa [#allocation3], 1
    %210 = vsyncpa [#allocation6], 1
    %211 = vsyncpa [#allocation4], 1

</llo_original>
